<compile_context>
chip_gen: v7x
topology: tpu7x:2x2x1
jax: 0.10.0
libtpu: 0.0.40
codegen_flags: <defaults>
</compile_context>

<pallas_src>
import functools

import jax
import jax.numpy as jnp
from jax.experimental import pallas as pl
from jax.experimental.pallas import tpu as pltpu


def _ceil_to(a, m):
    return ((a + m - 1) // m) * m


# -----------------------------------------------------------------------------
# Kernel 1: per-(node-tile, etype) projections; q/v emitted transposed so the
# gate kernel is lane-dense over src.
# -----------------------------------------------------------------------------
def _proj_kernel(x_ref, xt_ref, wk_ref, wqt_ref, wvt_ref, bkq_ref, bvt_ref,
                 k_ref, qt_ref, vt_ref):
    xb = x_ref[...]                       # (tile_n, fin)
    xtb = xt_ref[...]                     # (fin, tile_n)
    k_ref[...] = (jnp.dot(xb, wk_ref[...], preferred_element_type=jnp.float32)
                  + bkq_ref[...])         # bk + bq folded into the dst gate term
    qt_ref[...] = jnp.dot(wqt_ref[...], xtb, preferred_element_type=jnp.float32)
    vt_ref[...] = (jnp.dot(wvt_ref[...], xtb, preferred_element_type=jnp.float32)
                   + bvt_ref[...])        # bv folded into the values


# -----------------------------------------------------------------------------
# Kernel 2: gated aggregation + fused skip / mean / relu / L2-normalize.
# Grid: (dst_tiles [parallel], etypes [arbitrary], src_tiles [arbitrary]).
# Output block is resident across both reduction axes (accumulator).
# -----------------------------------------------------------------------------
def _gate_msg_kernel(k_ref, qt_ref, vt_ref, a_ref, x_ref, ws_ref, bm_ref,
                     out_ref, *, inv_t, eps):
    t = pl.program_id(1)
    s = pl.program_id(2)

    @pl.when((t == 0) & (s == 0))
    def _():
        out_ref[...] = jnp.zeros_like(out_ref)

    k = k_ref[...]                            # (tile_m, fpad)   dst gate term
    qt = qt_ref[...]                          # (fpad, tile_s)   src gate term
    vt = vt_ref[...]                          # (fpad, tile_s)   src values
    a = a_ref[...].astype(jnp.float32)        # (tile_m, tile_s) edge counts (bf16 in HBM)

    # (dst, feat, src) layout: src on the 128-lane axis -> dense lanes.
    # sigmoid(z) == 0.5*tanh(0.5*z)+0.5: one EUP op instead of exp + precise divide.
    z = k[:, :, None] + qt[None, :, :]                       # (tile_m, fpad, tile_s)
    gate = 0.5 * jnp.tanh(0.5 * z) + 0.5
    msg = jnp.sum(gate * vt[None, :, :] * a[:, None, :], axis=2)   # (tile_m, fpad)
    out_ref[...] += msg

    @pl.when((t == pl.num_programs(1) - 1) & (s == pl.num_programs(2) - 1))
    def _():
        # skip = x @ sum_t Ws_t (never round-trips HBM); mean over etypes + bias.
        skip = jnp.dot(x_ref[...], ws_ref[...], preferred_element_type=jnp.float32)
        h = (out_ref[...] + skip) * inv_t + bm_ref[...]
        h = jnp.maximum(h, 0.0)                               # F.relu
        ss = jnp.sum(h * h, axis=1, keepdims=True)
        # F.normalize(p=2, dim=1); rsqrt goes to the EUP slot.
        out_ref[...] = h * jax.lax.rsqrt(jnp.maximum(ss, eps * eps))


def hetero_resgated_layer(x, adj, params):
    """One HeteroResGatedGraphConvLayer (reduction='mean') + relu + L2-normalize
    (+ eval-mode dropout identity)."""
    wk, wq, wv, ws, bk, bq, bv, b = params
    num_etypes, n_nodes, _ = adj.shape
    fin = x.shape[1]
    fout = wk.shape[-1]
    f32 = jnp.float32

    # Feature dim sits on sublanes inside the 3D gate -> pad to a multiple of 8.
    fpad = _ceil_to(fout, 8)

    # Node tiling: pad N so tiles always divide; keep the 3D gate temp small
    # (a few MiB) and give the parallel dst axis >=2 tiles for v7x megacore.
    if n_nodes <= 256:
        npad = _ceil_to(n_nodes, 16)
        tile_m = npad // 2           # >=2 dst tiles
        tile_s = npad                # single src tile (full dim -> lane rule OK)
        tile_n1 = npad               # kernel-1 node tile (full dim for x^T block)
    else:
        npad = _ceil_to(n_nodes, 128)
        tile_m = 128
        tile_s = 128
        tile_n1 = 128

    def pad_w(w):   # (T, fin, fout) -> (T, fin, fpad); pads stay zero end-to-end
        return jnp.pad(w.astype(f32), ((0, 0), (0, 0), (0, fpad - fout)))

    def pad_b(v):   # (T, 1, fout) -> (T, 1, fpad)
        return jnp.pad(v.astype(f32), ((0, 0), (0, 0), (0, fpad - fout)))

    wk_p = pad_w(wk)                                      # (T, fin, fpad)
    wqT_p = jnp.transpose(pad_w(wq), (0, 2, 1))           # (T, fpad, fin)
    wvT_p = jnp.transpose(pad_w(wv), (0, 2, 1))           # (T, fpad, fin)
    ws_sum = jnp.sum(pad_w(ws), axis=0)                   # (fin, fpad)
    bkq = pad_b(bk) + pad_b(bq)                           # (T, 1, fpad)
    bvT = jnp.transpose(pad_b(bv), (0, 2, 1))             # (T, fpad, 1)
    b_mean = jnp.mean(pad_b(b), axis=0)                   # (1, fpad)

    x_p = jnp.pad(x.astype(f32), ((0, npad - n_nodes), (0, 0)))     # (npad, fin)
    xT_p = jnp.transpose(x_p)                                       # (fin, npad)
    # bf16 adjacency: exact for integer edge counts < 256, halves the largest
    # HBM stream and the adj VMEM block.
    adj_p = jnp.pad(adj.astype(f32),
                    ((0, 0), (0, npad - n_nodes), (0, npad - n_nodes))
                    ).astype(jnp.bfloat16)                          # (T, npad, npad)

    # --- Kernel 1: projections ------------------------------------------------
    k_all, qT_all, vT_all = pl.pallas_call(
        _proj_kernel,
        out_shape=(
            jax.ShapeDtypeStruct((num_etypes, npad, fpad), f32),
            jax.ShapeDtypeStruct((num_etypes, fpad, npad), f32),
            jax.ShapeDtypeStruct((num_etypes, fpad, npad), f32),
        ),
        grid_spec=pltpu.PrefetchScalarGridSpec(
            num_scalar_prefetch=0,
            grid=(npad // tile_n1, num_etypes),
            in_specs=[
                pl.BlockSpec((tile_n1, fin), lambda i, t: (i, 0)),        # x
                pl.BlockSpec((fin, tile_n1), lambda i, t: (0, i)),        # x^T
                pl.BlockSpec((None, fin, fpad), lambda i, t: (t, 0, 0)),  # Wk
                pl.BlockSpec((None, fpad, fin), lambda i, t: (t, 0, 0)),  # Wq^T
                pl.BlockSpec((None, fpad, fin), lambda i, t: (t, 0, 0)),  # Wv^T
                pl.BlockSpec((None, 1, fpad), lambda i, t: (t, 0, 0)),    # bk+bq
                pl.BlockSpec((None, fpad, 1), lambda i, t: (t, 0, 0)),    # bv^T
            ],
            out_specs=[
                pl.BlockSpec((None, tile_n1, fpad), lambda i, t: (t, i, 0)),
                pl.BlockSpec((None, fpad, tile_n1), lambda i, t: (t, 0, i)),
                pl.BlockSpec((None, fpad, tile_n1), lambda i, t: (t, 0, i)),
            ],
        ),
        compiler_params=pltpu.CompilerParams(
            dimension_semantics=("parallel", "parallel")),
    )(x_p, xT_p, wk_p, wqT_p, wvT_p, bkq, bvT)

    # --- Kernel 2: gated message passing + fused epilogue ---------------------
    kernel = functools.partial(_gate_msg_kernel,
                               inv_t=1.0 / num_etypes, eps=1e-12)

    out_pad = pl.pallas_call(
        kernel,
        out_shape=jax.ShapeDtypeStruct((npad, fpad), f32),
        grid_spec=pltpu.PrefetchScalarGridSpec(
            num_scalar_prefetch=0,
            grid=(npad // tile_m, num_etypes, npad // tile_s),
            in_specs=[
                # dst gate term for this etype / dst tile
                pl.BlockSpec((None, tile_m, fpad), lambda i, t, s: (t, i, 0)),
                # transposed src gate term / values for this etype / src tile
                pl.BlockSpec((None, fpad, tile_s), lambda i, t, s: (t, 0, s)),
                pl.BlockSpec((None, fpad, tile_s), lambda i, t, s: (t, 0, s)),
                # adjacency block (bf16), dst rows x src cols of this etype
                pl.BlockSpec((None, tile_m, tile_s), lambda i, t, s: (t, i, s)),
                # raw features (skip connection, epilogue only)
                pl.BlockSpec((tile_m, fin), lambda i, t, s: (i, 0)),
                # sum_t Ws_t and mean bias (constant, resident blocks)
                pl.BlockSpec((fin, fpad), lambda i, t, s: (0, 0)),
                pl.BlockSpec((1, fpad), lambda i, t, s: (0, 0)),
            ],
            out_specs=pl.BlockSpec((tile_m, fpad), lambda i, t, s: (i, 0)),
        ),
        compiler_params=pltpu.CompilerParams(
            dimension_semantics=("parallel", "arbitrary", "arbitrary"),
            vmem_limit_bytes=48 * 1024 * 1024),
    )(k_all, qT_all, vT_all, adj_p, x_p, ws_sum, b_mean)

    return out_pad[:n_nodes, :fout]


def init_layer_params(key, num_etypes, fin, fout):
    """Deterministic stand-in for ResGatedGraphConv.reset_parameters()."""
    ks = jax.random.split(key, 8)
    scale = 1.0 / jnp.sqrt(jnp.float32(fin))

    def w(k):   # stored pre-transposed: y = x @ W
        return jax.random.normal(k, (num_etypes, fin, fout), jnp.float32) * scale

    def bvec(k):
        return jax.random.normal(k, (num_etypes, 1, fout), jnp.float32) * 0.01

    return (w(ks[0]), w(ks[1]), w(ks[2]), w(ks[3]),
            bvec(ks[4]), bvec(ks[5]), bvec(ks[6]), bvec(ks[7]))


def hresgated_forward(x, adj, layer_params):
    h = x
    for params in layer_params:
        # relu + L2-normalize fused into the kernel; dropout is eval-mode identity
        h = hetero_resgated_layer(h, adj, params)
    return h


if __name__ == "__main__":
    key = jax.random.PRNGKey(0)
    k_x, k_src, k_dst, k_et, k_params = jax.random.split(key, 5)

    # Small, module-consistent shapes.
    num_nodes = 16
    num_edges = 40
    in_feats, n_hidden, out_feats, n_layers = 8, 32, 16, 2
    etypes = {'onset': 0, 'consecutive': 1, 'during': 2, 'rest': 3,
              'consecutive_rev': 4, 'during_rev': 5, 'rest_rev': 6}
    num_etypes = len(etypes)

    x = jax.random.normal(k_x, (num_nodes, in_feats), jnp.float32)
    src = jax.random.randint(k_src, (num_edges,), 0, num_nodes, jnp.int32)
    dst = jax.random.randint(k_dst, (num_edges,), 0, num_nodes, jnp.int32)
    edge_index = jnp.stack([src, dst])                        # (2, E)
    edge_type = jax.random.randint(k_et, (num_edges,), 0, num_etypes, jnp.int32)

    # Glue: dense per-etype adjacency (counts duplicates, matching 'add' aggr).
    adj = jnp.zeros((num_etypes, num_nodes, num_nodes), jnp.float32)
    adj = adj.at[edge_type, dst, src].add(1.0)

    # Layer dims: in->hidden, (n_layers-1) x hidden->hidden, hidden->out.
    dims = [(in_feats, n_hidden)]
    dims += [(n_hidden, n_hidden)] * (n_layers - 1)
    dims += [(n_hidden, out_feats)]

    layer_keys = jax.random.split(k_params, len(dims))
    layer_params = [init_layer_params(lk, num_etypes, fi, fo)
                    for lk, (fi, fo) in zip(layer_keys, dims)]

    out = hresgated_forward(x, adj, layer_params)
    jax.block_until_ready(out)
    assert out.shape == (num_nodes, out_feats)
    print("KERNEL_OK")
</pallas_src>

<mosaic_0001>
module attributes {stable_mosaic.version = 11 : i64} {
  func.func @_proj_kernel(%arg0: i32, %arg1: i32, %arg2: memref<16x8xf32, #tpu.memory_space<vmem>>, %arg3: memref<8x16xf32, #tpu.memory_space<vmem>>, %arg4: memref<1x8x32xf32, #tpu.memory_space<vmem>>, %arg5: memref<1x32x8xf32, #tpu.memory_space<vmem>>, %arg6: memref<1x32x8xf32, #tpu.memory_space<vmem>>, %arg7: memref<1x1x32xf32, #tpu.memory_space<vmem>>, %arg8: memref<1x32x1xf32, #tpu.memory_space<vmem>>, %arg9: memref<1x16x32xf32, #tpu.memory_space<vmem>>, %arg10: memref<1x32x16xf32, #tpu.memory_space<vmem>>, %arg11: memref<1x32x16xf32, #tpu.memory_space<vmem>>) attributes {dimension_semantics = [#tpu.dimension_semantics<parallel>, #tpu.dimension_semantics<parallel>], iteration_bounds = array<i64: 1, 7>, scalar_prefetch = 0 : i64, scratch_operands = 0 : i64, tpu.core_type = #tpu.core_type<tc>, window_params = [{transform_indices = @transform_0, window_bounds = array<i64: 16, 8>}, {transform_indices = @transform_1, window_bounds = array<i64: 8, 16>}, {transform_indices = @transform_2, window_bounds = array<i64: 1, 8, 32>}, {transform_indices = @transform_3, window_bounds = array<i64: 1, 32, 8>}, {transform_indices = @transform_4, window_bounds = array<i64: 1, 32, 8>}, {transform_indices = @transform_5, window_bounds = array<i64: 1, 1, 32>}, {transform_indices = @transform_6, window_bounds = array<i64: 1, 32, 1>}, {transform_indices = @transform_7, window_bounds = array<i64: 1, 16, 32>}, {transform_indices = @transform_8, window_bounds = array<i64: 1, 32, 16>}, {transform_indices = @transform_9, window_bounds = array<i64: 1, 32, 16>}]} {
    %c0 = arith.constant 0 : index
    %c0_0 = arith.constant 0 : index
    %0 = vector.load %arg2[%c0, %c0_0] : memref<16x8xf32, #tpu.memory_space<vmem>>, vector<16x8xf32>
    %c0_1 = arith.constant 0 : index
    %c0_2 = arith.constant 0 : index
    %1 = vector.load %arg3[%c0_1, %c0_2] : memref<8x16xf32, #tpu.memory_space<vmem>>, vector<8x16xf32>
    %c0_3 = arith.constant 0 : index
    %c0_4 = arith.constant 0 : index
    %c0_5 = arith.constant 0 : index
    %2 = vector.load %arg4[%c0_3, %c0_4, %c0_5] : memref<1x8x32xf32, #tpu.memory_space<vmem>>, vector<1x8x32xf32>
    %3 = vector.shape_cast %2 : vector<1x8x32xf32> to vector<8x32xf32>
    %cst = arith.constant dense<0.000000e+00> : vector<16x32xf32>
    %4 = tpu.matmul %0, %3, %cst {dimension_numbers = #tpu.dot_dimension_numbers<[1], [0], [0], [1], [0, 0, 1, 1], [], []>} : vector<16x8xf32>, vector<8x32xf32>, vector<16x32xf32> -> vector<16x32xf32>
    %c0_6 = arith.constant 0 : index
    %c0_7 = arith.constant 0 : index
    %c0_8 = arith.constant 0 : index
    %5 = vector.load %arg7[%c0_6, %c0_7, %c0_8] : memref<1x1x32xf32, #tpu.memory_space<vmem>>, vector<1x1x32xf32>
    %6 = vector.shape_cast %5 : vector<1x1x32xf32> to vector<1x32xf32>
    %7 = vector.broadcast %6 : vector<1x32xf32> to vector<16x32xf32>
    %8 = arith.addf %4, %7 : vector<16x32xf32>
    %c0_9 = arith.constant 0 : index
    %c0_10 = arith.constant 0 : index
    %c0_11 = arith.constant 0 : index
    %9 = vector.load %arg9[%c0_9, %c0_10, %c0_11] : memref<1x16x32xf32, #tpu.memory_space<vmem>>, vector<1x16x32xf32>
    %10 = vector.shape_cast %9 : vector<1x16x32xf32> to vector<16x32xf32>
    %11 = vector.shape_cast %8 : vector<16x32xf32> to vector<1x16x32xf32>
    tpu.vector_store %arg9[%c0_9, %c0_10, %c0_11], %11 {strides = array<i32>} : memref<1x16x32xf32, #tpu.memory_space<vmem>>, vector<1x16x32xf32>,
    %c0_12 = arith.constant 0 : index
    %c0_13 = arith.constant 0 : index
    %c0_14 = arith.constant 0 : index
    %12 = vector.load %arg5[%c0_12, %c0_13, %c0_14] : memref<1x32x8xf32, #tpu.memory_space<vmem>>, vector<1x32x8xf32>
    %13 = vector.shape_cast %12 : vector<1x32x8xf32> to vector<32x8xf32>
    %cst_15 = arith.constant dense<0.000000e+00> : vector<32x16xf32>
    %14 = tpu.matmul %13, %1, %cst_15 {dimension_numbers = #tpu.dot_dimension_numbers<[1], [0], [0], [1], [0, 0, 1, 1], [], []>} : vector<32x8xf32>, vector<8x16xf32>, vector<32x16xf32> -> vector<32x16xf32>
    %c0_16 = arith.constant 0 : index
    %c0_17 = arith.constant 0 : index
    %c0_18 = arith.constant 0 : index
    %15 = vector.load %arg10[%c0_16, %c0_17, %c0_18] : memref<1x32x16xf32, #tpu.memory_space<vmem>>, vector<1x32x16xf32>
    %16 = vector.shape_cast %15 : vector<1x32x16xf32> to vector<32x16xf32>
    %17 = vector.shape_cast %14 : vector<32x16xf32> to vector<1x32x16xf32>
    tpu.vector_store %arg10[%c0_16, %c0_17, %c0_18], %17 {strides = array<i32>} : memref<1x32x16xf32, #tpu.memory_space<vmem>>, vector<1x32x16xf32>,
    %c0_19 = arith.constant 0 : index
    %c0_20 = arith.constant 0 : index
    %c0_21 = arith.constant 0 : index
    %18 = vector.load %arg6[%c0_19, %c0_20, %c0_21] : memref<1x32x8xf32, #tpu.memory_space<vmem>>, vector<1x32x8xf32>
    %19 = vector.shape_cast %18 : vector<1x32x8xf32> to vector<32x8xf32>
    %cst_22 = arith.constant dense<0.000000e+00> : vector<32x16xf32>
    %20 = tpu.matmul %19, %1, %cst_22 {dimension_numbers = #tpu.dot_dimension_numbers<[1], [0], [0], [1], [0, 0, 1, 1], [], []>} : vector<32x8xf32>, vector<8x16xf32>, vector<32x16xf32> -> vector<32x16xf32>
    %c0_23 = arith.constant 0 : index
    %c0_24 = arith.constant 0 : index
    %c0_25 = arith.constant 0 : index
    %21 = vector.load %arg8[%c0_23, %c0_24, %c0_25] : memref<1x32x1xf32, #tpu.memory_space<vmem>>, vector<1x32x1xf32>
    %22 = vector.shape_cast %21 : vector<1x32x1xf32> to vector<32x1xf32>
    %23 = vector.broadcast %22 : vector<32x1xf32> to vector<32x16xf32>
    %24 = arith.addf %20, %23 : vector<32x16xf32>
    %c0_26 = arith.constant 0 : index
    %c0_27 = arith.constant 0 : index
    %c0_28 = arith.constant 0 : index
    %25 = vector.load %arg11[%c0_26, %c0_27, %c0_28] : memref<1x32x16xf32, #tpu.memory_space<vmem>>, vector<1x32x16xf32>
    %26 = vector.shape_cast %25 : vector<1x32x16xf32> to vector<32x16xf32>
    %27 = vector.shape_cast %24 : vector<32x16xf32> to vector<1x32x16xf32>
    tpu.vector_store %arg11[%c0_26, %c0_27, %c0_28], %27 {strides = array<i32>} : memref<1x32x16xf32, #tpu.memory_space<vmem>>, vector<1x32x16xf32>,
    return
  }
  func.func @transform_0(%arg0: i32, %arg1: i32) -> (i32, i32) {
    %c0_i32 = arith.constant 0 : i32
    %c0_i32_0 = arith.constant 0 : i32
    return %arg0, %c0_i32 : i32, i32
  }
  func.func @transform_1(%arg0: i32, %arg1: i32) -> (i32, i32) {
    %c0_i32 = arith.constant 0 : i32
    %c0_i32_0 = arith.constant 0 : i32
    return %c0_i32, %arg0 : i32, i32
  }
  func.func @transform_2(%arg0: i32, %arg1: i32) -> (i32, i32, i32) {
    %c0_i32 = arith.constant 0 : i32
    %c0_i32_0 = arith.constant 0 : i32
    %c0_i32_1 = arith.constant 0 : i32
    return %arg1, %c0_i32, %c0_i32_0 : i32, i32, i32
  }
  func.func @transform_3(%arg0: i32, %arg1: i32) -> (i32, i32, i32) {
    %c0_i32 = arith.constant 0 : i32
    %c0_i32_0 = arith.constant 0 : i32
    %c0_i32_1 = arith.constant 0 : i32
    return %arg1, %c0_i32, %c0_i32_0 : i32, i32, i32
  }
  func.func @transform_4(%arg0: i32, %arg1: i32) -> (i32, i32, i32) {
    %c0_i32 = arith.constant 0 : i32
    %c0_i32_0 = arith.constant 0 : i32
    %c0_i32_1 = arith.constant 0 : i32
    return %arg1, %c0_i32, %c0_i32_0 : i32, i32, i32
  }
  func.func @transform_5(%arg0: i32, %arg1: i32) -> (i32, i32, i32) {
    %c0_i32 = arith.constant 0 : i32
    %c0_i32_0 = arith.constant 0 : i32
    %c0_i32_1 = arith.constant 0 : i32
    return %arg1, %c0_i32, %c0_i32_0 : i32, i32, i32
  }
  func.func @transform_6(%arg0: i32, %arg1: i32) -> (i32, i32, i32) {
    %c0_i32 = arith.constant 0 : i32
    %c0_i32_0 = arith.constant 0 : i32
    %c0_i32_1 = arith.constant 0 : i32
    return %arg1, %c0_i32, %c0_i32_0 : i32, i32, i32
  }
  func.func @transform_7(%arg0: i32, %arg1: i32) -> (i32, i32, i32) {
    %c0_i32 = arith.constant 0 : i32
    %c0_i32_0 = arith.constant 0 : i32
    return %arg1, %arg0, %c0_i32 : i32, i32, i32
  }
  func.func @transform_8(%arg0: i32, %arg1: i32) -> (i32, i32, i32) {
    %c0_i32 = arith.constant 0 : i32
    %c0_i32_0 = arith.constant 0 : i32
    return %arg1, %c0_i32, %arg0 : i32, i32, i32
  }
  func.func @transform_9(%arg0: i32, %arg1: i32) -> (i32, i32, i32) {
    %c0_i32 = arith.constant 0 : i32
    %c0_i32_0 = arith.constant 0 : i32
    return %arg1, %c0_i32, %arg0 : i32, i32, i32
  }
}

</mosaic_0001>

<llo_original>
// kernel: tpu_custom_call.1
$region0: #{tpu_custom_call.1}
  #allocation0 [shape = 'u32[]', space=smem, size = 0x4, offset = 0x4, fixed_abs, tag = 'smem constant byte address 0x4 - core index']
  #allocation1 [shape = 'u32[144,128]{1,0:T(1,128)}', space=vmem, size = 0x12000, scoped, tag = 'internal scratch']
  %s0 = inlined_call_operand.vmem [shape: f32[16,8], index: 0, kind: input, shape index: {}]
  %s1 = inlined_call_operand.vmem [shape: f32[8,16], index: 1, kind: input, shape index: {}]
  %s2 = inlined_call_operand.vmem [shape: f32[7,8,32], index: 2, kind: input, shape index: {}]
  %s3 = inlined_call_operand.vmem [shape: f32[7,32,8], index: 3, kind: input, shape index: {}]
  %s4 = inlined_call_operand.vmem [shape: f32[7,32,8], index: 4, kind: input, shape index: {}]
  %s5 = inlined_call_operand.vmem [shape: f32[7,1,32], index: 5, kind: input, shape index: {}]
  %s6 = inlined_call_operand.vmem [shape: f32[7,32,1], index: 6, kind: input, shape index: {}]
  %s7 = inlined_call_operand.hbm [shape: f32[7,16,32], index: 7, kind: output, shape index: {0}]
  %s8 = inlined_call_operand.vmem [shape: f32[7,32,16], index: 8, kind: output, shape index: {1}]
  %s9 = inlined_call_operand.vmem [shape: f32[7,32,16], index: 9, kind: output, shape index: {2}]
  %10 = xla_tuple %s7, %s8, %s9
  %s11 = sld [smem:[#allocation0]]
  $region77: #{tpu_custom_call.1} parent=0
    _
  %s13 = ssub.s32 1, %s11
  %s14 = scalar_select 0, %s13, %s11
  $region1: #{tpu_custom_call.1} parent=0
    #allocation2 [shape = 'u8[16384]{0}', space=vmem, size = 0x4000, scoped, tag = 'output window, operand 0']
    #allocation3 [shape = 's32[2]{0}', space=sflag, size = 0x8, scoped, tag = 'scoped memory for tpu_custom_call.1']
    %15 = vsyncpa [#allocation3], 0
    %s16 = scalar_lea.sflag [#allocation3], 1
    %17 = vsyncpa %s16, 0
    loop: start=0, step=1, limit=9
    $region2: #{tpu_custom_call.1} parent=1 // loop_pre_header
      _
    $region3: #{tpu_custom_call.1} parent=1 // loop_header
      %s19 = sphi 0, %s23
      %p20 = scmp.ge.s32.totalorder %s19, 9
      %s26 = sphi 0, %s38
      %s27 = sphi 0, %s34
      %s28 = sphi 0, %s26
      %s29 = sphi 0, %s27
      %s30 = sphi 0, %s28
      %s31 = sphi 0, %s29
      %s41 = sphi 0, %s43
      %s44 = sphi 0, %s41
      %s45 = sphi 0, %s44
      %s61 = sphi 0, %s45
      %s67 = sphi 0, %s69
      %s70 = sphi 0, %s67
      %s71 = sphi 0, %s70
      %s87 = sphi 0, %s71
      %s93 = sphi 0, %s95
      %s96 = sphi 0, %s93
      %s97 = sphi 0, %s96
      %s113 = sphi 0, %s97
      %s119 = sphi 0, %s121
      %s122 = sphi 0, %s119
      %s123 = sphi 0, %s122
      %s139 = sphi 0, %s123
      %s145 = sphi 0, %s147
      %s148 = sphi 0, %s145
      %s149 = sphi 0, %s148
      %s165 = sphi 0, %s149
      %s171 = sphi 0, %s173
      %s174 = sphi 0, %s171
      %s175 = sphi 0, %s174
      %s191 = sphi 0, %s175
      %s197 = sphi 0, %s199
      %s200 = sphi 0, %s197
      %s201 = sphi 0, %s200
      %s217 = sphi 0, %s201
      %s225 = sphi 0, %s227
      %s228 = sphi 0, %s225
      %s229 = sphi 0, %s228
      %s245 = sphi 0, %s229
      %s253 = sphi 0, %s255
      %s256 = sphi 0, %s253
      %s257 = sphi 0, %s256
      %s273 = sphi 0, %s257
      %s281 = sphi 0, %s283
      %s284 = sphi 0, %s281
      %s285 = sphi 0, %s284
      %s301 = sphi 0, %s285
    $region4: #{tpu_custom_call.1} parent=1 // loop_header_branch
      %22 = sbr.rel (%p20) target = $region8
    $region5: #{tpu_custom_call.1} parent=1 // loop_body
      %s24 = ssub.s32 %s19, 1
      %s25 = ssub.s32 %s19, 2
      %s32 = sadd.s32 1, %s27
      %p33 = scmp.ge.s32.totalorder %s32, 7
      %s34 = scalar_select %p33, 0, %s32
      %s35 = sadd.s32 1, %s26
      %s36 = scalar_select %p33, %s35, %s26
      %p37 = scmp.ge.s32.totalorder %s36, 1
      %s38 = scalar_select %p37, 0, %s36
      %s39 = ssub.s32 %s26, %s38
      %p40 = scmp.eq.s32.totalorder %s39, 0
      %s42 = sadd.s32 %s41, 1
      %s43 = scalar_select %p40, %s41, %s42
      %p46 = pneg %p40
      %p47 = scmp.eq.s32.totalorder %s19, 6
      %p48 = por %p46, %p47
      %p49 = scmp.ne.s32.totalorder %s41, %s44
      %p50 = scmp.eq.s32.totalorder %s19, 0
      %p51 = por %p49, %p50
      %p52 = scmp.ne.s32.totalorder %s41, %s44
      %p53 = scmp.eq.s32.totalorder %s24, 6
      %p54 = por %p52, %p53
      %p55 = scmp.ne.s32.totalorder %s44, %s45
      %p56 = scmp.eq.s32.totalorder %s24, 0
      %p57 = por %p55, %p56
      %p58 = scmp.ne.s32.totalorder %s44, %s45
      %p59 = scmp.eq.s32.totalorder %s25, 6
      %p60 = por %p58, %p59
      %p62 = scmp.ne.s32.totalorder %s45, %s61
      %p63 = scmp.eq.s32.totalorder %s25, 0
      %p64 = por %p62, %p63
      %s65 = ssub.s32 %s26, %s38
      %p66 = scmp.eq.s32.totalorder %s65, 0
      %s68 = sadd.s32 %s67, 1
      %s69 = scalar_select %p66, %s67, %s68
      %p72 = pneg %p66
      %p73 = scmp.eq.s32.totalorder %s19, 6
      %p74 = por %p72, %p73
      %p75 = scmp.ne.s32.totalorder %s67, %s70
      %p76 = scmp.eq.s32.totalorder %s19, 0
      %p77 = por %p75, %p76
      %p78 = scmp.ne.s32.totalorder %s67, %s70
      %p79 = scmp.eq.s32.totalorder %s24, 6
      %p80 = por %p78, %p79
      %p81 = scmp.ne.s32.totalorder %s70, %s71
      %p82 = scmp.eq.s32.totalorder %s24, 0
      %p83 = por %p81, %p82
      %p84 = scmp.ne.s32.totalorder %s70, %s71
      %p85 = scmp.eq.s32.totalorder %s25, 6
      %p86 = por %p84, %p85
      %p88 = scmp.ne.s32.totalorder %s71, %s87
      %p89 = scmp.eq.s32.totalorder %s25, 0
      %p90 = por %p88, %p89
      %s91 = ssub.s32 %s27, %s34
      %p92 = scmp.eq.s32.totalorder %s91, 0
      %s94 = sadd.s32 %s93, 1
      %s95 = scalar_select %p92, %s93, %s94
      %p98 = pneg %p92
      %p99 = scmp.eq.s32.totalorder %s19, 6
      %p100 = por %p98, %p99
      %p101 = scmp.ne.s32.totalorder %s93, %s96
      %p102 = scmp.eq.s32.totalorder %s19, 0
      %p103 = por %p101, %p102
      %p104 = scmp.ne.s32.totalorder %s93, %s96
      %p105 = scmp.eq.s32.totalorder %s24, 6
      %p106 = por %p104, %p105
      %p107 = scmp.ne.s32.totalorder %s96, %s97
      %p108 = scmp.eq.s32.totalorder %s24, 0
      %p109 = por %p107, %p108
      %p110 = scmp.ne.s32.totalorder %s96, %s97
      %p111 = scmp.eq.s32.totalorder %s25, 6
      %p112 = por %p110, %p111
      %p114 = scmp.ne.s32.totalorder %s97, %s113
      %p115 = scmp.eq.s32.totalorder %s25, 0
      %p116 = por %p114, %p115
      %s117 = ssub.s32 %s27, %s34
      %p118 = scmp.eq.s32.totalorder %s117, 0
      %s120 = sadd.s32 %s119, 1
      %s121 = scalar_select %p118, %s119, %s120
      %p124 = pneg %p118
      %p125 = scmp.eq.s32.totalorder %s19, 6
      %p126 = por %p124, %p125
      %p127 = scmp.ne.s32.totalorder %s119, %s122
      %p128 = scmp.eq.s32.totalorder %s19, 0
      %p129 = por %p127, %p128
      %p130 = scmp.ne.s32.totalorder %s119, %s122
      %p131 = scmp.eq.s32.totalorder %s24, 6
      %p132 = por %p130, %p131
      %p133 = scmp.ne.s32.totalorder %s122, %s123
      %p134 = scmp.eq.s32.totalorder %s24, 0
      %p135 = por %p133, %p134
      %p136 = scmp.ne.s32.totalorder %s122, %s123
      %p137 = scmp.eq.s32.totalorder %s25, 6
      %p138 = por %p136, %p137
      %p140 = scmp.ne.s32.totalorder %s123, %s139
      %p141 = scmp.eq.s32.totalorder %s25, 0
      %p142 = por %p140, %p141
      %s143 = ssub.s32 %s27, %s34
      %p144 = scmp.eq.s32.totalorder %s143, 0
      %s146 = sadd.s32 %s145, 1
      %s147 = scalar_select %p144, %s145, %s146
      %p150 = pneg %p144
      %p151 = scmp.eq.s32.totalorder %s19, 6
      %p152 = por %p150, %p151
      %p153 = scmp.ne.s32.totalorder %s145, %s148
      %p154 = scmp.eq.s32.totalorder %s19, 0
      %p155 = por %p153, %p154
      %p156 = scmp.ne.s32.totalorder %s145, %s148
      %p157 = scmp.eq.s32.totalorder %s24, 6
      %p158 = por %p156, %p157
      %p159 = scmp.ne.s32.totalorder %s148, %s149
      %p160 = scmp.eq.s32.totalorder %s24, 0
      %p161 = por %p159, %p160
      %p162 = scmp.ne.s32.totalorder %s148, %s149
      %p163 = scmp.eq.s32.totalorder %s25, 6
      %p164 = por %p162, %p163
      %p166 = scmp.ne.s32.totalorder %s149, %s165
      %p167 = scmp.eq.s32.totalorder %s25, 0
      %p168 = por %p166, %p167
      %s169 = ssub.s32 %s27, %s34
      %p170 = scmp.eq.s32.totalorder %s169, 0
      %s172 = sadd.s32 %s171, 1
      %s173 = scalar_select %p170, %s171, %s172
      %p176 = pneg %p170
      %p177 = scmp.eq.s32.totalorder %s19, 6
      %p178 = por %p176, %p177
      %p179 = scmp.ne.s32.totalorder %s171, %s174
      %p180 = scmp.eq.s32.totalorder %s19, 0
      %p181 = por %p179, %p180
      %p182 = scmp.ne.s32.totalorder %s171, %s174
      %p183 = scmp.eq.s32.totalorder %s24, 6
      %p184 = por %p182, %p183
      %p185 = scmp.ne.s32.totalorder %s174, %s175
      %p186 = scmp.eq.s32.totalorder %s24, 0
      %p187 = por %p185, %p186
      %p188 = scmp.ne.s32.totalorder %s174, %s175
      %p189 = scmp.eq.s32.totalorder %s25, 6
      %p190 = por %p188, %p189
      %p192 = scmp.ne.s32.totalorder %s175, %s191
      %p193 = scmp.eq.s32.totalorder %s25, 0
      %p194 = por %p192, %p193
      %s195 = ssub.s32 %s27, %s34
      %p196 = scmp.eq.s32.totalorder %s195, 0
      %s198 = sadd.s32 %s197, 1
      %s199 = scalar_select %p196, %s197, %s198
      %p202 = pneg %p196
      %p203 = scmp.eq.s32.totalorder %s19, 6
      %p204 = por %p202, %p203
      %p205 = scmp.ne.s32.totalorder %s197, %s200
      %p206 = scmp.eq.s32.totalorder %s19, 0
      %p207 = por %p205, %p206
      %p208 = scmp.ne.s32.totalorder %s197, %s200
      %p209 = scmp.eq.s32.totalorder %s24, 6
      %p210 = por %p208, %p209
      %p211 = scmp.ne.s32.totalorder %s200, %s201
      %p212 = scmp.eq.s32.totalorder %s24, 0
      %p213 = por %p211, %p212
      %p214 = scmp.ne.s32.totalorder %s200, %s201
      %p215 = scmp.eq.s32.totalorder %s25, 6
      %p216 = por %p214, %p215
      %p218 = scmp.ne.s32.totalorder %s201, %s217
      %p219 = scmp.eq.s32.totalorder %s25, 0
      %p220 = por %p218, %p219
      %s221 = ssub.s32 %s27, %s34
      %s222 = ssub.s32 %s26, %s38
      %s223 = sor.u32 %s221, %s222
      %p224 = scmp.eq.s32.totalorder %s223, 0
      %s226 = sadd.s32 %s225, 1
      %s227 = scalar_select %p224, %s225, %s226
      %p230 = pneg %p224
      %p231 = scmp.eq.s32.totalorder %s19, 6
      %p232 = por %p230, %p231
      %p233 = scmp.ne.s32.totalorder %s225, %s228
      %p234 = scmp.eq.s32.totalorder %s19, 0
      %p235 = por %p233, %p234
      %p236 = scmp.ne.s32.totalorder %s225, %s228
      %p237 = scmp.eq.s32.totalorder %s24, 6
      %p238 = por %p236, %p237
      %p239 = scmp.ne.s32.totalorder %s228, %s229
      %p240 = scmp.eq.s32.totalorder %s24, 0
      %p241 = por %p239, %p240
      %p242 = scmp.ne.s32.totalorder %s228, %s229
      %p243 = scmp.eq.s32.totalorder %s25, 6
      %p244 = por %p242, %p243
      %p246 = scmp.ne.s32.totalorder %s229, %s245
      %p247 = scmp.eq.s32.totalorder %s25, 0
      %p248 = por %p246, %p247
      %s249 = ssub.s32 %s27, %s34
      %s250 = ssub.s32 %s26, %s38
      %s251 = sor.u32 %s249, %s250
      %p252 = scmp.eq.s32.totalorder %s251, 0
      %s254 = sadd.s32 %s253, 1
      %s255 = scalar_select %p252, %s253, %s254
      %p258 = pneg %p252
      %p259 = scmp.eq.s32.totalorder %s19, 6
      %p260 = por %p258, %p259
      %p261 = scmp.ne.s32.totalorder %s253, %s256
      %p262 = scmp.eq.s32.totalorder %s19, 0
      %p263 = por %p261, %p262
      %p264 = scmp.ne.s32.totalorder %s253, %s256
      %p265 = scmp.eq.s32.totalorder %s24, 6
      %p266 = por %p264, %p265
      %p267 = scmp.ne.s32.totalorder %s256, %s257
      %p268 = scmp.eq.s32.totalorder %s24, 0
      %p269 = por %p267, %p268
      %p270 = scmp.ne.s32.totalorder %s256, %s257
      %p271 = scmp.eq.s32.totalorder %s25, 6
      %p272 = por %p270, %p271
      %p274 = scmp.ne.s32.totalorder %s257, %s273
      %p275 = scmp.eq.s32.totalorder %s25, 0
      %p276 = por %p274, %p275
      %s277 = ssub.s32 %s27, %s34
      %s278 = ssub.s32 %s26, %s38
      %s279 = sor.u32 %s277, %s278
      %p280 = scmp.eq.s32.totalorder %s279, 0
      %s282 = sadd.s32 %s281, 1
      %s283 = scalar_select %p280, %s281, %s282
      %p286 = pneg %p280
      %p287 = scmp.eq.s32.totalorder %s19, 6
      %p288 = por %p286, %p287
      %p289 = scmp.ne.s32.totalorder %s281, %s284
      %p290 = scmp.eq.s32.totalorder %s19, 0
      %p291 = por %p289, %p290
      %p292 = scmp.ne.s32.totalorder %s281, %s284
      %p293 = scmp.eq.s32.totalorder %s24, 6
      %p294 = por %p292, %p293
      %p295 = scmp.ne.s32.totalorder %s284, %s285
      %p296 = scmp.eq.s32.totalorder %s24, 0
      %p297 = por %p295, %p296
      %p298 = scmp.ne.s32.totalorder %s284, %s285
      %p299 = scmp.eq.s32.totalorder %s25, 6
      %p300 = por %p298, %p299
      %p302 = scmp.ne.s32.totalorder %s285, %s301
      %p303 = scmp.eq.s32.totalorder %s25, 0
      %p304 = por %p302, %p303
      %p305 = scmp.le.s32.totalorder 1, %s19
      %p306 = scmp.lt.s32.totalorder %s19, 8
      %p307 = pnand %p305, %p306
      %p308 = pneg %p307
      // Predicated region
      $region9: #{tpu_custom_call.1} parent=5 // pred_check
        _
      $region10: #{tpu_custom_call.1} parent=5 // pred_check_branch
        %310 = sbr.rel (%p307) target = $region12
      $region11: #{tpu_custom_call.1} parent=5 // pred_region
        %s311 = ssub.s32 %s19, 1
        // Predicated region
        $region13: #{tpu_custom_call.1} parent=11 // pred_check
          %p312 = pneg %p57
        $region14: #{tpu_custom_call.1} parent=11 // pred_check_branch
          %314 = sbr.rel (%p312) target = $region16
        $region15: #{tpu_custom_call.1} parent=11 // pred_region
          %s315 = smul.u32 2, %s28
          %p316 = scmp.lt.s32.totalorder %s315, 1
          %s317 = scalar_select %p316, %s315, 1
          %s318 = smul.addr %s317, 8
          %s319 = scalar_lea.vmem %s0, %s318
          %s320 = smul.u32 2, %s28
        $region16: #{tpu_custom_call.1} parent=11 // pred_fallthru
          _
        // Predicated region
        $region17: #{tpu_custom_call.1} parent=11 // pred_check
          %p321 = pneg %p83
        $region18: #{tpu_custom_call.1} parent=11 // pred_check_branch
          %323 = sbr.rel (%p321) target = $region20
        $region19: #{tpu_custom_call.1} parent=11 // pred_region
          %p324 = scmp.lt.s32.totalorder %s28, 0
          %s325 = scalar_select %p324, %s28, 0
          %s326 = smul.addr %s325, 8
          %s327 = scalar_lea.vmem %s1, %s326
        $region20: #{tpu_custom_call.1} parent=11 // pred_fallthru
          _
      $region12: #{tpu_custom_call.1} parent=5 // pred_fallthru
        _
      %p328 = scmp.lt.s32.totalorder %s19, 7
      // Predicated region
      $region21: #{tpu_custom_call.1} parent=5 // pred_check
        %p329 = pneg %p328
      $region22: #{tpu_custom_call.1} parent=5 // pred_check_branch
        %331 = sbr.rel (%p329) target = $region24
      $region23: #{tpu_custom_call.1} parent=5 // pred_region
        // Predicated region
        $region25: #{tpu_custom_call.1} parent=23 // pred_check
          %p332 = pneg %p103
        $region26: #{tpu_custom_call.1} parent=23 // pred_check_branch
          %334 = sbr.rel (%p332) target = $region28
        $region27: #{tpu_custom_call.1} parent=23 // pred_region
          %p335 = scmp.lt.s32.totalorder %s27, 6
          %s336 = scalar_select %p335, %s27, 6
          %s337 = smul.addr %s336, 8
          %s338 = scalar_lea.vmem %s2, %s337
        $region28: #{tpu_custom_call.1} parent=23 // pred_fallthru
          _
        // Predicated region
        $region29: #{tpu_custom_call.1} parent=23 // pred_check
          %p339 = pneg %p129
        $region30: #{tpu_custom_call.1} parent=23 // pred_check_branch
          %341 = sbr.rel (%p339) target = $region32
        $region31: #{tpu_custom_call.1} parent=23 // pred_region
          %p342 = scmp.lt.s32.totalorder %s27, 6
          %s343 = scalar_select %p342, %s27, 6
          %s344 = smul.addr %s343, 4
          %s345 = smul.addr %s344, 8
          %s346 = scalar_lea.vmem %s3, %s345
        $region32: #{tpu_custom_call.1} parent=23 // pred_fallthru
          _
        // Predicated region
        $region33: #{tpu_custom_call.1} parent=23 // pred_check
          %p347 = pneg %p155
        $region34: #{tpu_custom_call.1} parent=23 // pred_check_branch
          %349 = sbr.rel (%p347) target = $region36
        $region35: #{tpu_custom_call.1} parent=23 // pred_region
          %p350 = scmp.lt.s32.totalorder %s27, 6
          %s351 = scalar_select %p350, %s27, 6
          %s352 = smul.addr %s351, 4
          %s353 = smul.addr %s352, 8
          %s354 = scalar_lea.vmem %s4, %s353
        $region36: #{tpu_custom_call.1} parent=23 // pred_fallthru
          _
        // Predicated region
        $region37: #{tpu_custom_call.1} parent=23 // pred_check
          %p355 = pneg %p181
        $region38: #{tpu_custom_call.1} parent=23 // pred_check_branch
          %357 = sbr.rel (%p355) target = $region40
        $region39: #{tpu_custom_call.1} parent=23 // pred_region
          %p358 = scmp.lt.s32.totalorder %s27, 6
          %s359 = scalar_select %p358, %s27, 6
          %s360 = scalar_lea.vmem %s5, %s359
        $region40: #{tpu_custom_call.1} parent=23 // pred_fallthru
          _
        // Predicated region
        $region41: #{tpu_custom_call.1} parent=23 // pred_check
          %p361 = pneg %p207
        $region42: #{tpu_custom_call.1} parent=23 // pred_check_branch
          %363 = sbr.rel (%p361) target = $region44
        $region43: #{tpu_custom_call.1} parent=23 // pred_region
          %p364 = scmp.lt.s32.totalorder %s27, 6
          %s365 = scalar_select %p364, %s27, 6
          %s366 = smul.addr %s365, 4
          %s367 = smul.addr %s366, 8
          %s368 = scalar_lea.vmem %s6, %s367
        $region44: #{tpu_custom_call.1} parent=23 // pred_fallthru
          _
      $region24: #{tpu_custom_call.1} parent=5 // pred_fallthru
        _
      %p369 = scmp.le.s32.totalorder 1, %s19
      %p370 = scmp.lt.s32.totalorder %s19, 8
      %p371 = pnand %p369, %p370
      %p372 = pneg %p371
      // Predicated region
      $region45: #{tpu_custom_call.1} parent=5 // pred_check
        _
      $region46: #{tpu_custom_call.1} parent=5 // pred_check_branch
        %374 = sbr.rel (%p371) target = $region48
      $region47: #{tpu_custom_call.1} parent=5 // pred_region
        %s375 = ssub.s32 %s19, 1
        %s376 = smul.u32 2, %s28
        %p377 = scmp.lt.s32.totalorder %s376, 1
        %s378 = scalar_select %p377, %s376, 1
        %s379 = smul.addr %s378, 8
        %s380 = scalar_lea.vmem %s0, %s379
        %p381 = pneg %p57
        %p382 = pneg %p54
        %p383 = scmp.lt.s32.totalorder %s28, 0
        %s384 = scalar_select %p383, %s28, 0
        %s385 = smul.addr %s384, 8
        %s386 = scalar_lea.vmem %s1, %s385
        %p387 = pneg %p83
        %p388 = pneg %p80
        %p389 = scmp.lt.s32.totalorder %s29, 6
        %s390 = scalar_select %p389, %s29, 6
        %s391 = smul.addr %s390, 8
        %s392 = scalar_lea.vmem %s2, %s391
        %p393 = pneg %p109
        %p394 = pneg %p106
        %p395 = scmp.lt.s32.totalorder %s29, 6
        %s396 = scalar_select %p395, %s29, 6
        %s397 = smul.addr %s396, 4
        %s398 = smul.addr %s397, 8
        %s399 = scalar_lea.vmem %s3, %s398
        %p400 = pneg %p135
        %p401 = pneg %p132
        %p402 = scmp.lt.s32.totalorder %s29, 6
        %s403 = scalar_select %p402, %s29, 6
        %s404 = smul.addr %s403, 4
        %s405 = smul.addr %s404, 8
        %s406 = scalar_lea.vmem %s4, %s405
        %p407 = pneg %p161
        %p408 = pneg %p158
        %p409 = scmp.lt.s32.totalorder %s29, 6
        %s410 = scalar_select %p409, %s29, 6
        %s411 = scalar_lea.vmem %s5, %s410
        %p412 = pneg %p187
        %p413 = pneg %p184
        %p414 = scmp.lt.s32.totalorder %s29, 6
        %s415 = scalar_select %p414, %s29, 6
        %s416 = smul.addr %s415, 4
        %s417 = smul.addr %s416, 8
        %s418 = scalar_lea.vmem %s6, %s417
        %p419 = pneg %p213
        %p420 = pneg %p210
        %p421 = pneg %p241
        %p422 = pneg %p238
        %s423 = sand.u32 %s228, 1
        %s424 = scalar_lea.sflag [#allocation3], %s423
        %s425 = sand.u32 %s228, 1
        %s426 = smul.addr %s425, 16
        %s427 = scalar_lea.vmem [#allocation2], %s426
        %p428 = pneg %p269
        %p429 = pneg %p266
        %p430 = scmp.lt.s32.totalorder %s29, 6
        %s431 = scalar_select %p430, %s29, 6
        %p432 = scmp.lt.s32.totalorder %s28, 0
        %s433 = scalar_select %p432, %s28, 0
        %s434 = smul.addr %s431, 4
        %s435 = sadd.s32 %s433, %s434
        %s436 = smul.addr %s435, 8
        %s437 = scalar_lea.vmem %s8, %s436
        %p438 = pneg %p297
        %p439 = pneg %p294
        %p440 = scmp.lt.s32.totalorder %s29, 6
        %s441 = scalar_select %p440, %s29, 6
        %p442 = scmp.lt.s32.totalorder %s28, 0
        %s443 = scalar_select %p442, %s28, 0
        %s444 = smul.addr %s441, 4
        %s445 = sadd.s32 %s443, %s444
        %s446 = smul.addr %s445, 8
        %s447 = scalar_lea.vmem %s9, %s446
        %s448 = smul.u32 2, %s28
        %p449 = scmp.lt.s32.totalorder %s448, 1
        %s450 = scalar_select %p449, %s448, 1
        %s451 = smul.addr %s450, 8
        %s452 = scalar_lea.vmem %s0, %s451
        %s453 = smul.u32 2, %s28
        %p454 = scmp.lt.s32.totalorder %s28, 0
        %s455 = scalar_select %p454, %s28, 0
        %s456 = smul.addr %s455, 8
        %s457 = scalar_lea.vmem %s1, %s456
        %p458 = scmp.lt.s32.totalorder %s29, 6
        %s459 = scalar_select %p458, %s29, 6
        %s460 = smul.addr %s459, 8
        %s461 = scalar_lea.vmem %s2, %s460
        %p462 = scmp.lt.s32.totalorder %s29, 6
        %s463 = scalar_select %p462, %s29, 6
        %s464 = smul.addr %s463, 4
        %s465 = smul.addr %s464, 8
        %s466 = scalar_lea.vmem %s3, %s465
        %p467 = scmp.lt.s32.totalorder %s29, 6
        %s468 = scalar_select %p467, %s29, 6
        %s469 = smul.addr %s468, 4
        %s470 = smul.addr %s469, 8
        %s471 = scalar_lea.vmem %s4, %s470
        %p472 = scmp.lt.s32.totalorder %s29, 6
        %s473 = scalar_select %p472, %s29, 6
        %s474 = scalar_lea.vmem %s5, %s473
        %p475 = scmp.lt.s32.totalorder %s29, 6
        %s476 = scalar_select %p475, %s29, 6
        %s477 = smul.addr %s476, 4
        %s478 = smul.addr %s477, 8
        %s479 = scalar_lea.vmem %s6, %s478
        %s480 = smul.u32 2, %s28
        %p481 = scmp.lt.s32.totalorder %s29, 6
        %s482 = scalar_select %p481, %s29, 6
        %p483 = scmp.lt.s32.totalorder %s28, 0
        %s484 = scalar_select %p483, %s28, 0
        %s485 = smul.addr %s482, 4
        %s486 = sadd.s32 %s484, %s485
        %s487 = smul.addr %s486, 8
        %s488 = scalar_lea.vmem %s8, %s487
        %p489 = scmp.lt.s32.totalorder %s29, 6
        %s490 = scalar_select %p489, %s29, 6
        %p491 = scmp.lt.s32.totalorder %s28, 0
        %s492 = scalar_select %p491, %s28, 0
        %s493 = smul.addr %s490, 4
        %s494 = sadd.s32 %s492, %s493
        %s495 = smul.addr %s494, 8
        %s496 = scalar_lea.vmem %s9, %s495
        %v497 = vld [vmem:[%s452] sm:$0xff]
        %v498 = vld [vmem:[%s452 + $0x8] sm:$0xff]
        %v499 = vld [vmem:[%s457] sm:$0xff]
        %v500 = vld [vmem:[%s461] sm:$0xff]
        %v501 = vld [vmem:[%s474] sm:$0x1]
        %v503 = vlaneseq
        %v504 = vshrl.u32 %v503, 7
        %v505 = vsub.s32 0, %v504
        %v506 = vrot.slane %v501, %v505
        %vm508 = vcmask 64512
        %v510 = vsel %vm508, %v497, 0
        %v513 = vsel %vm508, %v498, 0
        %515 = vmatprep.subr.mxu0 0.0
        %516 = vmatpush1.msra.mxu0 %v500
        %517 = vmatprep.subr.mxu0 0.0
        %518 = vmatpush1.msra.mxu0 0.0
        %519 = vmatprep.subr.mxu0 0.0
        %520 = vmatpush1.msra.mxu0 0.0
        %521 = vmatprep.subr.mxu0 0.0
        %522 = vmatpush1.msra.mxu0 0.0
        %523 = vmatprep.subr.mxu0 0.0
        %524 = vmatpush1.msra.mxu0 0.0
        %525 = vmatprep.subr.mxu0 0.0
        %526 = vmatpush1.msra.mxu0 0.0
        %527 = vmatprep.subr.mxu0 0.0
        %528 = vmatpush1.msra.mxu0 0.0
        %529 = vmatprep.subr.mxu0 0.0
        %530 = vmatpush1.msra.mxu0 0.0
        %531 = vmatprep.subr.mxu0 0.0
        %532 = vmatpush1.msra.mxu0 0.0
        %533 = vmatprep.subr.mxu0 0.0
        %534 = vmatpush1.msra.mxu0 0.0
        %535 = vmatprep.subr.mxu0 0.0
        %536 = vmatpush1.msra.mxu0 0.0
        %537 = vmatprep.subr.mxu0 0.0
        %538 = vmatpush1.msra.mxu0 0.0
        %539 = vmatprep.subr.mxu0 0.0
        %540 = vmatpush1.msra.mxu0 0.0
        %541 = vmatprep.subr.mxu0 0.0
        %542 = vmatpush1.msra.mxu0 0.0
        %543 = vmatprep.subr.mxu0 0.0
        %544 = vmatpush1.msra.mxu0 0.0
        %545 = vmatprep.subr.mxu0 0.0
        %546 = vmatpush1.msra.mxu0 0.0
        %547 = vmatprep.subr.mxu0 0.0
        %548 = vmatpush1.msra.mxu0 0.0
        %549 = vmatprep.subr.mxu0 0.0
        %550 = vmatpush1.msra.mxu0 0.0
        %551 = vmatprep.subr.mxu0 0.0
        %552 = vmatpush1.msra.mxu0 0.0
        %553 = vmatprep.subr.mxu0 0.0
        %554 = vmatpush1.msra.mxu0 0.0
        %555 = vmatprep.subr.mxu0 0.0
        %556 = vmatpush1.msra.mxu0 0.0
        %557 = vmatprep.subr.mxu0 0.0
        %558 = vmatpush1.msra.mxu0 0.0
        %559 = vmatprep.subr.mxu0 0.0
        %560 = vmatpush1.msra.mxu0 0.0
        %561 = vmatprep.subr.mxu0 0.0
        %562 = vmatpush1.msra.mxu0 0.0
        %563 = vmatprep.subr.mxu0 0.0
        %564 = vmatpush1.msra.mxu0 0.0
        %565 = vmatprep.subr.mxu0 0.0
        %566 = vmatpush1.msra.mxu0 0.0
        %567 = vmatprep.subr.mxu0 0.0
        %568 = vmatpush1.msra.mxu0 0.0
        %569 = vmatprep.subr.mxu0 0.0
        %570 = vmatpush1.msra.mxu0 0.0
        %571 = vmatprep.subr.mxu0 0.0
        %572 = vmatpush1.msra.mxu0 0.0
        %573 = vmatprep.subr.mxu0 0.0
        %574 = vmatpush1.msra.mxu0 0.0
        %575 = vmatprep.subr.mxu0 0.0
        %576 = vmatpush1.msra.mxu0 0.0
        %577 = vmatprep.subr.mxu0 0.0
        %578 = vmatpush1.msra.mxu0 0.0
        %579 = vmatprep.mubr.f32.mxu0 0.0
        %580 = vmatmul.mubr.f32.gmra.mrb[0].mxu0 %v510
        %v581 = vpop.f32.mrb[0].mxu0
        %v582 = vadd.f32 %v506, %v581
        %v583 = vpop.f32.mrb[0].mxu0
        %584 = vmatprep.mubr.f32.mxu0 0.0
        %585 = vmatmul.mubr.f32.gmra.mrb[0].mxu0 %v513
        %v586 = vpop.f32.mrb[0].mxu0
        %v587 = vadd.f32 %v506, %v586
        %v588 = vpop.f32.mrb[0].mxu0
        %589 = vdwg.mxu0
        %vm590 = vcmask 261120
        %591 = vst.msk [vmem:[%s427] sm:$0xff] %vm590, %v582
        %592 = vst.msk [vmem:[%s427 + $0x8] sm:$0xff] %vm590, %v587
        %v593 = vld [vmem:[%s466] sm:$0xff]
        %v594 = vld [vmem:[%s466 + $0x8] sm:$0xff]
        %v595 = vld [vmem:[%s466 + $0x10] sm:$0xff]
        %v596 = vld [vmem:[%s466 + $0x18] sm:$0xff]
        %v598 = vsel %vm508, %v593, 0
        %v601 = vsel %vm508, %v594, 0
        %v604 = vsel %vm508, %v595, 0
        %v607 = vsel %vm508, %v596, 0
        %609 = vmatprep.subr.mxu0 0.0
        %610 = vmatpush1.msra.mxu0 %v499
        %611 = vmatprep.subr.mxu0 0.0
        %612 = vmatpush1.msra.mxu0 0.0
        %613 = vmatprep.subr.mxu0 0.0
        %614 = vmatpush1.msra.mxu0 0.0
        %615 = vmatprep.subr.mxu0 0.0
        %616 = vmatpush1.msra.mxu0 0.0
        %617 = vmatprep.subr.mxu0 0.0
        %618 = vmatpush1.msra.mxu0 0.0
        %619 = vmatprep.subr.mxu0 0.0
        %620 = vmatpush1.msra.mxu0 0.0
        %621 = vmatprep.subr.mxu0 0.0
        %622 = vmatpush1.msra.mxu0 0.0
        %623 = vmatprep.subr.mxu0 0.0
        %624 = vmatpush1.msra.mxu0 0.0
        %625 = vmatprep.subr.mxu0 0.0
        %626 = vmatpush1.msra.mxu0 0.0
        %627 = vmatprep.subr.mxu0 0.0
        %628 = vmatpush1.msra.mxu0 0.0
        %629 = vmatprep.subr.mxu0 0.0
        %630 = vmatpush1.msra.mxu0 0.0
        %631 = vmatprep.subr.mxu0 0.0
        %632 = vmatpush1.msra.mxu0 0.0
        %633 = vmatprep.subr.mxu0 0.0
        %634 = vmatpush1.msra.mxu0 0.0
        %635 = vmatprep.subr.mxu0 0.0
        %636 = vmatpush1.msra.mxu0 0.0
        %637 = vmatprep.subr.mxu0 0.0
        %638 = vmatpush1.msra.mxu0 0.0
        %639 = vmatprep.subr.mxu0 0.0
        %640 = vmatpush1.msra.mxu0 0.0
        %641 = vmatprep.subr.mxu0 0.0
        %642 = vmatpush1.msra.mxu0 0.0
        %643 = vmatprep.subr.mxu0 0.0
        %644 = vmatpush1.msra.mxu0 0.0
        %645 = vmatprep.subr.mxu0 0.0
        %646 = vmatpush1.msra.mxu0 0.0
        %647 = vmatprep.subr.mxu0 0.0
        %648 = vmatpush1.msra.mxu0 0.0
        %649 = vmatprep.subr.mxu0 0.0
        %650 = vmatpush1.msra.mxu0 0.0
        %651 = vmatprep.subr.mxu0 0.0
        %652 = vmatpush1.msra.mxu0 0.0
        %653 = vmatprep.subr.mxu0 0.0
        %654 = vmatpush1.msra.mxu0 0.0
        %655 = vmatprep.subr.mxu0 0.0
        %656 = vmatpush1.msra.mxu0 0.0
        %657 = vmatprep.subr.mxu0 0.0
        %658 = vmatpush1.msra.mxu0 0.0
        %659 = vmatprep.subr.mxu0 0.0
        %660 = vmatpush1.msra.mxu0 0.0
        %661 = vmatprep.subr.mxu0 0.0
        %662 = vmatpush1.msra.mxu0 0.0
        %663 = vmatprep.subr.mxu0 0.0
        %664 = vmatpush1.msra.mxu0 0.0
        %665 = vmatprep.subr.mxu0 0.0
        %666 = vmatpush1.msra.mxu0 0.0
        %667 = vmatprep.subr.mxu0 0.0
        %668 = vmatpush1.msra.mxu0 0.0
        %669 = vmatprep.subr.mxu0 0.0
        %670 = vmatpush1.msra.mxu0 0.0
        %671 = vmatprep.subr.mxu0 0.0
        %672 = vmatpush1.msra.mxu0 0.0
        %673 = vmatprep.mubr.f32.mxu0 0.0
        %674 = vmatmul.mubr.f32.gmra.mrb[0].mxu0 %v598
        %v675 = vpop.f32.mrb[0].mxu0
        %v676 = vadd.f32 0.0, %v675
        %v677 = vpop.f32.mrb[0].mxu0
        %678 = vmatprep.mubr.f32.mxu0 0.0
        %679 = vmatmul.mubr.f32.gmra.mrb[0].mxu0 %v601
        %v680 = vpop.f32.mrb[0].mxu0
        %v681 = vadd.f32 0.0, %v680
        %v682 = vpop.f32.mrb[0].mxu0
        %683 = vmatprep.mubr.f32.mxu0 0.0
        %684 = vmatmul.mubr.f32.gmra.mrb[0].mxu0 %v604
        %v685 = vpop.f32.mrb[0].mxu0
        %v686 = vadd.f32 0.0, %v685
        %v687 = vpop.f32.mrb[0].mxu0
        %688 = vmatprep.mubr.f32.mxu0 0.0
        %689 = vmatmul.mubr.f32.gmra.mrb[0].mxu0 %v607
        %v690 = vpop.f32.mrb[0].mxu0
        %v691 = vadd.f32 0.0, %v690
        %v692 = vpop.f32.mrb[0].mxu0
        %693 = vdwg.mxu0
        %vm694 = vcmask 130048
        %695 = vst.msk [vmem:[%s488] sm:$0xff] %vm694, %v676
        %696 = vst.msk [vmem:[%s488 + $0x8] sm:$0xff] %vm694, %v681
        %697 = vst.msk [vmem:[%s488 + $0x10] sm:$0xff] %vm694, %v686
        %698 = vst.msk [vmem:[%s488 + $0x18] sm:$0xff] %vm694, %v691
        %v699 = vld [vmem:[%s471] sm:$0xff]
        %v700 = vld [vmem:[%s471 + $0x8] sm:$0xff]
        %v701 = vld [vmem:[%s471 + $0x10] sm:$0xff]
        %v702 = vld [vmem:[%s471 + $0x18] sm:$0xff]
        %v703 = vld [vmem:[%s479] sm:$0xff]
        %v704 = vld [vmem:[%s479 + $0x8] sm:$0xff]
        %v705 = vld [vmem:[%s479 + $0x10] sm:$0xff]
        %v706 = vld [vmem:[%s479 + $0x18] sm:$0xff]
        %708 = vset.pattern.permute.xlu0 0
        %709 = vperm.xlu0 %708, %v703
        %v710 = vpop.permute.xlu0 %709
        %713 = vset.pattern.permute.xlu0 0
        %714 = vperm.xlu0 %713, %v704
        %v715 = vpop.permute.xlu0 %714
        %718 = vset.pattern.permute.xlu0 0
        %719 = vperm.xlu0 %718, %v705
        %v720 = vpop.permute.xlu0 %719
        %723 = vset.pattern.permute.xlu0 0
        %724 = vperm.xlu0 %723, %v706
        %v725 = vpop.permute.xlu0 %724
        %v728 = vsel %vm508, %v699, 0
        %v731 = vsel %vm508, %v700, 0
        %v734 = vsel %vm508, %v701, 0
        %v737 = vsel %vm508, %v702, 0
        %739 = vmatprep.subr.mxu0 0.0
        %740 = vmatpush1.msra.mxu0 %v499
        %741 = vmatprep.subr.mxu0 0.0
        %742 = vmatpush1.msra.mxu0 0.0
        %743 = vmatprep.subr.mxu0 0.0
        %744 = vmatpush1.msra.mxu0 0.0
        %745 = vmatprep.subr.mxu0 0.0
        %746 = vmatpush1.msra.mxu0 0.0
        %747 = vmatprep.subr.mxu0 0.0
        %748 = vmatpush1.msra.mxu0 0.0
        %749 = vmatprep.subr.mxu0 0.0
        %750 = vmatpush1.msra.mxu0 0.0
        %751 = vmatprep.subr.mxu0 0.0
        %752 = vmatpush1.msra.mxu0 0.0
        %753 = vmatprep.subr.mxu0 0.0
        %754 = vmatpush1.msra.mxu0 0.0
        %755 = vmatprep.subr.mxu0 0.0
        %756 = vmatpush1.msra.mxu0 0.0
        %757 = vmatprep.subr.mxu0 0.0
        %758 = vmatpush1.msra.mxu0 0.0
        %759 = vmatprep.subr.mxu0 0.0
        %760 = vmatpush1.msra.mxu0 0.0
        %761 = vmatprep.subr.mxu0 0.0
        %762 = vmatpush1.msra.mxu0 0.0
        %763 = vmatprep.subr.mxu0 0.0
        %764 = vmatpush1.msra.mxu0 0.0
        %765 = vmatprep.subr.mxu0 0.0
        %766 = vmatpush1.msra.mxu0 0.0
        %767 = vmatprep.subr.mxu0 0.0
        %768 = vmatpush1.msra.mxu0 0.0
        %769 = vmatprep.subr.mxu0 0.0
        %770 = vmatpush1.msra.mxu0 0.0
        %771 = vmatprep.subr.mxu0 0.0
        %772 = vmatpush1.msra.mxu0 0.0
        %773 = vmatprep.subr.mxu0 0.0
        %774 = vmatpush1.msra.mxu0 0.0
        %775 = vmatprep.subr.mxu0 0.0
        %776 = vmatpush1.msra.mxu0 0.0
        %777 = vmatprep.subr.mxu0 0.0
        %778 = vmatpush1.msra.mxu0 0.0
        %779 = vmatprep.subr.mxu0 0.0
        %780 = vmatpush1.msra.mxu0 0.0
        %781 = vmatprep.subr.mxu0 0.0
        %782 = vmatpush1.msra.mxu0 0.0
        %783 = vmatprep.subr.mxu0 0.0
        %784 = vmatpush1.msra.mxu0 0.0
        %785 = vmatprep.subr.mxu0 0.0
        %786 = vmatpush1.msra.mxu0 0.0
        %787 = vmatprep.subr.mxu0 0.0
        %788 = vmatpush1.msra.mxu0 0.0
        %789 = vmatprep.subr.mxu0 0.0
        %790 = vmatpush1.msra.mxu0 0.0
        %791 = vmatprep.subr.mxu0 0.0
        %792 = vmatpush1.msra.mxu0 0.0
        %793 = vmatprep.subr.mxu0 0.0
        %794 = vmatpush1.msra.mxu0 0.0
        %795 = vmatprep.subr.mxu0 0.0
        %796 = vmatpush1.msra.mxu0 0.0
        %797 = vmatprep.subr.mxu0 0.0
        %798 = vmatpush1.msra.mxu0 0.0
        %799 = vmatprep.subr.mxu0 0.0
        %800 = vmatpush1.msra.mxu0 0.0
        %801 = vmatprep.subr.mxu0 0.0
        %802 = vmatpush1.msra.mxu0 0.0
        %803 = vmatprep.mubr.f32.mxu0 0.0
        %804 = vmatmul.mubr.f32.gmra.mrb[0].mxu0 %v728
        %v805 = vpop.f32.mrb[0].mxu0
        %v806 = vadd.f32 %v710, %v805
        %v807 = vpop.f32.mrb[0].mxu0
        %808 = vmatprep.mubr.f32.mxu0 0.0
        %809 = vmatmul.mubr.f32.gmra.mrb[0].mxu0 %v731
        %v810 = vpop.f32.mrb[0].mxu0
        %v811 = vadd.f32 %v715, %v810
        %v812 = vpop.f32.mrb[0].mxu0
        %813 = vmatprep.mubr.f32.mxu0 0.0
        %814 = vmatmul.mubr.f32.gmra.mrb[0].mxu0 %v734
        %v815 = vpop.f32.mrb[0].mxu0
        %v816 = vadd.f32 %v720, %v815
        %v817 = vpop.f32.mrb[0].mxu0
        %818 = vmatprep.mubr.f32.mxu0 0.0
        %819 = vmatmul.mubr.f32.gmra.mrb[0].mxu0 %v737
        %v820 = vpop.f32.mrb[0].mxu0
        %v821 = vadd.f32 %v725, %v820
        %v822 = vpop.f32.mrb[0].mxu0
        %823 = vdwg.mxu0
        %824 = vst.msk [vmem:[%s496] sm:$0xff] %vm694, %v806
        %825 = vst.msk [vmem:[%s496 + $0x8] sm:$0xff] %vm694, %v811
        %826 = vst.msk [vmem:[%s496 + $0x10] sm:$0xff] %vm694, %v816
        %827 = vst.msk [vmem:[%s496 + $0x18] sm:$0xff] %vm694, %v821
        %s828 = sand.u32 %s228, 1
        %s829 = scalar_lea.sflag [#allocation3], %s828
        %s830 = sand.u32 %s228, 1
        %s831 = smul.addr %s830, 16
        %s832 = scalar_lea.vmem [#allocation2], %s831
        %p833 = scmp.lt.s32.totalorder %s29, 6
        %s834 = scalar_select %p833, %s29, 6
        %p835 = scmp.lt.s32.totalorder %s28, 0
        %s836 = scalar_select %p835, %s28, 0
        %s837 = smul.addr %s834, 4
        %s838 = sadd.s32 %s836, %s837
        %s839 = smul.addr %s838, 8
        %s840 = scalar_lea.vmem %s8, %s839
        %p841 = scmp.lt.s32.totalorder %s29, 6
        %s842 = scalar_select %p841, %s29, 6
        %p843 = scmp.lt.s32.totalorder %s28, 0
        %s844 = scalar_select %p843, %s28, 0
        %s845 = smul.addr %s842, 4
        %s846 = sadd.s32 %s844, %s845
        %s847 = smul.addr %s846, 8
        %s848 = scalar_lea.vmem %s9, %s847
        // Predicated region
        $region49: #{tpu_custom_call.1} parent=47 // pred_check
          %p849 = pneg %p238
        $region50: #{tpu_custom_call.1} parent=47 // pred_check_branch
          %851 = sbr.rel (%p849) target = $region52
        $region51: #{tpu_custom_call.1} parent=47 // pred_region
          %s852 = smul.u32 2, %s28
          %s854 = ssub.s32 256, 256
          %855 = vsyncadd %s829, %s854
          %s856 = smul.addr %s29, 2
          %s857 = sadd.s32 %s852, %s856
          %s858 = smul.addr %s857, 128
          %s859 = scalar_lea.hbm %s7, %s858
          %s860 = sshll.u32 %s832, 4
          %s861 = int_to_ptr.vmem [resolvable:$true] %s860
          %866 = dma.vmem_to_hbm [thread:$0]  %s861, 256, %s859, %s829, 128, 128, 8
        $region52: #{tpu_custom_call.1} parent=47 // pred_fallthru
          _
        // Predicated region
        $region53: #{tpu_custom_call.1} parent=47 // pred_check
          %p867 = pneg %p266
        $region54: #{tpu_custom_call.1} parent=47 // pred_check_branch
          %869 = sbr.rel (%p867) target = $region56
        $region55: #{tpu_custom_call.1} parent=47 // pred_region
          _
        $region56: #{tpu_custom_call.1} parent=47 // pred_fallthru
          _
        // Predicated region
        $region57: #{tpu_custom_call.1} parent=47 // pred_check
          %p870 = pneg %p294
        $region58: #{tpu_custom_call.1} parent=47 // pred_check_branch
          %872 = sbr.rel (%p870) target = $region60
        $region59: #{tpu_custom_call.1} parent=47 // pred_region
          _
        $region60: #{tpu_custom_call.1} parent=47 // pred_fallthru
          _
      $region48: #{tpu_custom_call.1} parent=5 // pred_fallthru
        _
      %p873 = scmp.le.s32.totalorder 2, %s19
      // Predicated region
      $region61: #{tpu_custom_call.1} parent=5 // pred_check
        %p874 = pneg %p873
      $region62: #{tpu_custom_call.1} parent=5 // pred_check_branch
        %876 = sbr.rel (%p874) target = $region64
      $region63: #{tpu_custom_call.1} parent=5 // pred_region
        %s877 = ssub.s32 %s19, 2
        // Predicated region
        $region65: #{tpu_custom_call.1} parent=63 // pred_check
          %p878 = pneg %p244
        $region66: #{tpu_custom_call.1} parent=63 // pred_check_branch
          %880 = sbr.rel (%p878) target = $region68
        $region67: #{tpu_custom_call.1} parent=63 // pred_region
          %s881 = sand.u32 %s229, 1
          %s882 = scalar_lea.sflag [#allocation3], %s881
          %s883 = sand.u32 %s229, 1
          %s884 = smul.addr %s883, 16
          %s885 = scalar_lea.vmem [#allocation2], %s884
          %886 = dma.done %s882, 256
        $region68: #{tpu_custom_call.1} parent=63 // pred_fallthru
          _
        // Predicated region
        $region69: #{tpu_custom_call.1} parent=63 // pred_check
          %p887 = pneg %p272
        $region70: #{tpu_custom_call.1} parent=63 // pred_check_branch
          %889 = sbr.rel (%p887) target = $region72
        $region71: #{tpu_custom_call.1} parent=63 // pred_region
          %p890 = scmp.lt.s32.totalorder %s31, 6
          %s891 = scalar_select %p890, %s31, 6
          %p892 = scmp.lt.s32.totalorder %s30, 0
          %s893 = scalar_select %p892, %s30, 0
          %s894 = smul.addr %s891, 4
          %s895 = sadd.s32 %s893, %s894
          %s896 = smul.addr %s895, 8
          %s897 = scalar_lea.vmem %s8, %s896
        $region72: #{tpu_custom_call.1} parent=63 // pred_fallthru
          _
        // Predicated region
        $region73: #{tpu_custom_call.1} parent=63 // pred_check
          %p898 = pneg %p300
        $region74: #{tpu_custom_call.1} parent=63 // pred_check_branch
          %900 = sbr.rel (%p898) target = $region76
        $region75: #{tpu_custom_call.1} parent=63 // pred_region
          %p901 = scmp.lt.s32.totalorder %s31, 6
          %s902 = scalar_select %p901, %s31, 6
          %p903 = scmp.lt.s32.totalorder %s30, 0
          %s904 = scalar_select %p903, %s30, 0
          %s905 = smul.addr %s902, 4
          %s906 = sadd.s32 %s904, %s905
          %s907 = smul.addr %s906, 8
          %s908 = scalar_lea.vmem %s9, %s907
        $region76: #{tpu_custom_call.1} parent=63 // pred_fallthru
          _
      $region64: #{tpu_custom_call.1} parent=5 // pred_fallthru
        _
    $region6: #{tpu_custom_call.1} parent=1 // loop_footer
      %s23 = sadd.s32 1, %s19
    $region7: #{tpu_custom_call.1} parent=1 // loop_footer_branch
      %18 = sbr.rel target = $region3
    $region8: #{tpu_custom_call.1} parent=1 // loop_exit
      _
    %909 = vsyncpa [#allocation3], 1
    %s910 = scalar_lea.sflag [#allocation3], 1
    %911 = vsyncpa %s910, 1

</llo_original>
